<compile_context>
chip_gen: v7x
topology: tpu7x:2x2x1
jax: 0.10.0
libtpu: 0.0.40
codegen_flags: <defaults>
</compile_context>

<pallas_src>
import jax
import jax.numpy as jnp
from jax.experimental import pallas as pl
from jax.experimental.pallas import tpu as pltpu


def _attention_pool_kernel(x_ref, w1_ref, b1_ref, w2_ref, b2_ref, o_ref,
                           m_sc, l_sc, acc_sc):
    """Processes one (TB, TS, H) tile of hidden states.

    x_ref  : (TB, TS, H)  hidden-state tile
    w1_ref : (H, D2)      first linear weight (constant index_map -> fetched once)
    b1_ref : (1, D2)      first linear bias
    w2_ref : (1, D2)      second linear weight (D2 -> 1)
    b2_ref : (1, 1)       second linear bias (cancels in softmax; kept for parity)
    o_ref  : (TB, H)      pooled output, written on the last sequence step
    m_sc   : (TB, 1, 1)   running max of scores
    l_sc   : (TB, 1, 1)   running softmax denominator
    acc_sc : (TB, H)      running (unnormalized) weighted sum of hidden states
    """
    s_idx = pl.program_id(1)

    @pl.when(s_idx == 0)
    def _init():
        m_sc[...] = jnp.full_like(m_sc, -jnp.inf)
        l_sc[...] = jnp.zeros_like(l_sc)
        acc_sc[...] = jnp.zeros_like(acc_sc)

    x = x_ref[...]                                    # (TB, TS, H)
    tb, ts, h = x.shape

    # ---- attention scores for this tile (MXU matmul + VPU) ----------------
    xf = x.reshape(tb * ts, h)                        # collapse leading dims
    a = jnp.tanh(
        jnp.dot(xf, w1_ref[...], preferred_element_type=jnp.float32)
        + b1_ref[...].astype(jnp.float32))            # (TB*TS, D2)
    w2 = w2_ref[...].astype(jnp.float32)              # (1, D2), hoisted once
    s_flat = (jnp.sum(a * w2, axis=-1, keepdims=True)
              + b2_ref[0, 0].astype(jnp.float32))     # (TB*TS, 1)
    s = s_flat.reshape(tb, ts, 1)                     # (TB, TS, 1)

    # ---- online softmax over the sequence axis -----------------------------
    m_prev = m_sc[...]                                # (TB, 1, 1)
    m_new = jnp.maximum(m_prev, jnp.max(s, axis=1, keepdims=True))
    alpha = jnp.exp(m_prev - m_new)                   # (TB, 1, 1)
    p = jnp.exp(s - m_new)                            # (TB, TS, 1)
    l_sc[...] = alpha * l_sc[...] + jnp.sum(p, axis=1, keepdims=True)
    # Unnormalized weighted sum for this tile; p broadcasts across the H lanes.
    wsum = jnp.sum(p * x, axis=1)                     # (TB, H), f32
    acc_sc[...] = alpha.reshape(tb, 1) * acc_sc[...] + wsum
    m_sc[...] = m_new

    @pl.when(s_idx == pl.num_programs(1) - 1)
    def _finalize():
        o_ref[...] = (acc_sc[...] / l_sc[...].reshape(tb, 1)).astype(o_ref.dtype)


def _choose_block(dim: int, target: int) -> int:
    """Largest divisor of `dim` <= target that is a multiple of 8, else `dim`.

    Guarantees the block dim is either 8-divisible (sublane aligned) or the
    full array dim, satisfying the TPU (8, 128) block-shape constraint.
    """
    if dim <= target:
        return dim
    for cand in range(target, 7, -1):
        if dim % cand == 0 and cand % 8 == 0:
            return cand
    return dim


def attention_pooling_v1(hidden_states, w1, b1, w2, b2):
    """Attention pooling: softmax-over-seq of Linear(tanh(Linear(x))) weights.

    hidden_states: (B, S, H)
    w1: (H, D2)   == torch Linear(dim1, dim2).weight.T
    b1: (D2,)     == torch Linear(dim1, dim2).bias
    w2: (D2,)     == torch Linear(dim2, 1).weight[0]
    b2: ()        == torch Linear(dim2, 1).bias[0]
    Returns: (B, H) in the dtype of `hidden_states`.
    """
    B, S, H = hidden_states.shape
    D2 = w1.shape[1]
    assert w1.shape == (H, D2) and b1.shape == (D2,) and w2.shape == (D2,)

    # Batch tile: up to 8 rows -> sublane-dense (TB, H) output blocks.
    tb = _choose_block(B, 8)
    # Sequence tile: keep the x block near ~4 MiB; the running-softmax
    # accumulator makes VMEM use independent of S.
    row_bytes = max(1, tb * H * jnp.dtype(hidden_states.dtype).itemsize)
    ts_target = max(8, ((4 * 1024 * 1024) // row_bytes) // 8 * 8)
    ts = _choose_block(S, ts_target)

    grid = (B // tb, S // ts)

    b1_2d = b1.reshape(1, D2)
    w2_2d = w2.reshape(1, D2)
    b2_2d = jnp.asarray(b2).reshape(1, 1)

    return pl.pallas_call(
        _attention_pool_kernel,
        out_shape=jax.ShapeDtypeStruct((B, H), hidden_states.dtype),
        grid_spec=pltpu.PrefetchScalarGridSpec(
            num_scalar_prefetch=0,
            grid=grid,
            in_specs=[
                pl.BlockSpec((tb, ts, H), lambda b, s: (b, s, 0)),
                pl.BlockSpec((H, D2), lambda b, s: (0, 0)),   # weights: fetched once
                pl.BlockSpec((1, D2), lambda b, s: (0, 0)),
                pl.BlockSpec((1, D2), lambda b, s: (0, 0)),
                pl.BlockSpec((1, 1), lambda b, s: (0, 0)),
            ],
            out_specs=pl.BlockSpec((tb, H), lambda b, s: (b, 0)),
            scratch_shapes=[
                pltpu.VMEM((tb, 1, 1), jnp.float32),   # running max
                pltpu.VMEM((tb, 1, 1), jnp.float32),   # running denominator
                pltpu.VMEM((tb, H), jnp.float32),      # running weighted sum
            ],
        ),
        compiler_params=pltpu.CompilerParams(
            dimension_semantics=("parallel", "arbitrary"),
        ),
    )(hidden_states, w1, b1_2d, w2_2d, b2_2d)


def _reference(hidden_states, w1, b1, w2, b2):
    # Pure-JAX reference of the PyTorch forward.
    a = jnp.tanh(jnp.einsum("bsh,hd->bsd", hidden_states, w1) + b1)
    scores = jnp.einsum("bsd,d->bs", a, w2) + b2              # (B, S)
    weights = jax.nn.softmax(scores, axis=1)[..., None]        # softmax over seq
    return jnp.sum(weights * hidden_states, axis=1)


if __name__ == "__main__":
    key = jax.random.PRNGKey(0)
    kx, k1, kb1, k2, kb2 = jax.random.split(key, 5)

    B, S, H, D2 = 2, 8, 32, 16          # (batch, seq, dim1, dim2)
    x = jax.random.normal(kx, (B, S, H), dtype=jnp.float32)
    w1 = 0.25 * jax.random.normal(k1, (H, D2), dtype=jnp.float32)
    b1 = 0.25 * jax.random.normal(kb1, (D2,), dtype=jnp.float32)
    w2 = 0.25 * jax.random.normal(k2, (D2,), dtype=jnp.float32)
    b2 = 0.25 * jax.random.normal(kb2, (), dtype=jnp.float32)

    out = attention_pooling_v1(x, w1, b1, w2, b2)
    out = jax.block_until_ready(out)

    ref = _reference(x, w1, b1, w2, b2)
    assert out.shape == (B, H)
    # Loose-ish tolerance: XLA's default f32 matmul precision on TPU may differ
    # slightly from the kernel's MXU f32 path.
    assert jnp.allclose(out, ref, atol=5e-3, rtol=5e-3), (
        f"mismatch vs reference: max abs err {jnp.max(jnp.abs(out - ref)):.2e}")

    print("KERNEL_OK")
</pallas_src>

<mosaic_0001>
module attributes {stable_mosaic.version = 11 : i64} {
  func.func @_attention_pool_kernel(%arg0: i32, %arg1: i32, %arg2: memref<2x8x32xf32, #tpu.memory_space<vmem>>, %arg3: memref<32x16xf32, #tpu.memory_space<vmem>>, %arg4: memref<1x16xf32, #tpu.memory_space<vmem>>, %arg5: memref<1x16xf32, #tpu.memory_space<vmem>>, %arg6: memref<1x1xf32, #tpu.memory_space<vmem>>, %arg7: memref<2x32xf32, #tpu.memory_space<vmem>>, %arg8: memref<2x1x1xf32, #tpu.memory_space<vmem>>, %arg9: memref<2x1x1xf32, #tpu.memory_space<vmem>>, %arg10: memref<2x32xf32, #tpu.memory_space<vmem>>) attributes {dimension_semantics = [#tpu.dimension_semantics<parallel>, #tpu.dimension_semantics<arbitrary>], iteration_bounds = array<i64: 1, 1>, scalar_prefetch = 0 : i64, scratch_operands = 3 : i64, tpu.core_type = #tpu.core_type<tc>, window_params = [{transform_indices = @transform_0, window_bounds = array<i64: 2, 8, 32>}, {pipeline_mode = #tpu.pipeline_mode<synchronous>, transform_indices = @transform_1, window_bounds = array<i64: 32, 16>}, {pipeline_mode = #tpu.pipeline_mode<synchronous>, transform_indices = @transform_2, window_bounds = array<i64: 1, 16>}, {pipeline_mode = #tpu.pipeline_mode<synchronous>, transform_indices = @transform_3, window_bounds = array<i64: 1, 16>}, {pipeline_mode = #tpu.pipeline_mode<synchronous>, transform_indices = @transform_4, window_bounds = array<i64: 1, 1>}, {transform_indices = @transform_5, window_bounds = array<i64: 2, 32>}]} {
    %c0_i32 = arith.constant 0 : i32
    %0 = arith.cmpi eq, %arg1, %c0_i32 : i32
    %1 = arith.extui %0 : i1 to i32
    %c0_i32_0 = arith.constant 0 : i32
    %2 = arith.cmpi ne, %1, %c0_i32_0 : i32
    scf.if %2 {
      %cst_33 = arith.constant 0xFF800000 : f32
      %49 = vector.broadcast %cst_33 : f32 to vector<2x1x1xf32>
      %c0_34 = arith.constant 0 : index
      %c0_35 = arith.constant 0 : index
      %c0_36 = arith.constant 0 : index
      %50 = vector.load %arg8[%c0_34, %c0_35, %c0_36] : memref<2x1x1xf32, #tpu.memory_space<vmem>>, vector<2x1x1xf32>
      tpu.vector_store %arg8[%c0_34, %c0_35, %c0_36], %49 {strides = array<i32>} : memref<2x1x1xf32, #tpu.memory_space<vmem>>, vector<2x1x1xf32>,
      %cst_37 = arith.constant 0.000000e+00 : f32
      %51 = vector.broadcast %cst_37 : f32 to vector<2x1x1xf32>
      %c0_38 = arith.constant 0 : index
      %c0_39 = arith.constant 0 : index
      %c0_40 = arith.constant 0 : index
      %52 = vector.load %arg9[%c0_38, %c0_39, %c0_40] : memref<2x1x1xf32, #tpu.memory_space<vmem>>, vector<2x1x1xf32>
      tpu.vector_store %arg9[%c0_38, %c0_39, %c0_40], %51 {strides = array<i32>} : memref<2x1x1xf32, #tpu.memory_space<vmem>>, vector<2x1x1xf32>,
      %cst_41 = arith.constant 0.000000e+00 : f32
      %53 = vector.broadcast %cst_41 : f32 to vector<2x32xf32>
      %c0_42 = arith.constant 0 : index
      %c0_43 = arith.constant 0 : index
      %54 = vector.load %arg10[%c0_42, %c0_43] : memref<2x32xf32, #tpu.memory_space<vmem>>, vector<2x32xf32>
      tpu.vector_store %arg10[%c0_42, %c0_43], %53 {strides = array<i32>} : memref<2x32xf32, #tpu.memory_space<vmem>>, vector<2x32xf32>,
    } else {
    }
    %c0 = arith.constant 0 : index
    %c0_1 = arith.constant 0 : index
    %c0_2 = arith.constant 0 : index
    %3 = vector.load %arg2[%c0, %c0_1, %c0_2] : memref<2x8x32xf32, #tpu.memory_space<vmem>>, vector<2x8x32xf32>
    %4 = vector.shape_cast %3 : vector<2x8x32xf32> to vector<16x32xf32>
    %c0_3 = arith.constant 0 : index
    %c0_4 = arith.constant 0 : index
    %5 = vector.load %arg3[%c0_3, %c0_4] : memref<32x16xf32, #tpu.memory_space<vmem>>, vector<32x16xf32>
    %cst = arith.constant dense<0.000000e+00> : vector<16x16xf32>
    %6 = tpu.matmul %4, %5, %cst {dimension_numbers = #tpu.dot_dimension_numbers<[1], [0], [0], [1], [0, 0, 1, 1], [], []>} : vector<16x32xf32>, vector<32x16xf32>, vector<16x16xf32> -> vector<16x16xf32>
    %c0_5 = arith.constant 0 : index
    %c0_6 = arith.constant 0 : index
    %7 = vector.load %arg4[%c0_5, %c0_6] : memref<1x16xf32, #tpu.memory_space<vmem>>, vector<1x16xf32>
    %8 = vector.broadcast %7 : vector<1x16xf32> to vector<16x16xf32>
    %9 = arith.addf %6, %8 : vector<16x16xf32>
    %10 = math.tanh %9 : vector<16x16xf32>
    %c0_7 = arith.constant 0 : index
    %c0_8 = arith.constant 0 : index
    %11 = vector.load %arg5[%c0_7, %c0_8] : memref<1x16xf32, #tpu.memory_space<vmem>>, vector<1x16xf32>
    %12 = vector.broadcast %11 : vector<1x16xf32> to vector<16x16xf32>
    %13 = arith.mulf %10, %12 : vector<16x16xf32>
    %cst_9 = arith.constant dense<0.000000e+00> : vector<16xf32>
    %14 = vector.multi_reduction <add>, %13, %cst_9 [1] : vector<16x16xf32> to vector<16xf32>
    %15 = vector.shape_cast %14 : vector<16xf32> to vector<16x1xf32>
    %c0_10 = arith.constant 0 : index
    %c0_11 = arith.constant 0 : index
    %16 = vector.load %arg6[%c0_10, %c0_11] : memref<1x1xf32, #tpu.memory_space<vmem>>, vector<1x1xf32>
    %17 = vector.extract %16[0, 0] : f32 from vector<1x1xf32>
    %18 = vector.broadcast %17 : f32 to vector<16x1xf32>
    %19 = arith.addf %15, %18 : vector<16x1xf32>
    %20 = vector.shape_cast %19 : vector<16x1xf32> to vector<2x8x1xf32>
    %c0_12 = arith.constant 0 : index
    %c0_13 = arith.constant 0 : index
    %c0_14 = arith.constant 0 : index
    %21 = vector.load %arg8[%c0_12, %c0_13, %c0_14] : memref<2x1x1xf32, #tpu.memory_space<vmem>>, vector<2x1x1xf32>
    %cst_15 = arith.constant dense<0xFF800000> : vector<2x1xf32>
    %22 = vector.multi_reduction <maximumf>, %20, %cst_15 [1] : vector<2x8x1xf32> to vector<2x1xf32>
    %23 = vector.shape_cast %22 : vector<2x1xf32> to vector<2x1x1xf32>
    %24 = arith.maximumf %21, %23 : vector<2x1x1xf32>
    %25 = arith.subf %21, %24 : vector<2x1x1xf32>
    %26 = math.exp %25 : vector<2x1x1xf32>
    %27 = vector.broadcast %24 : vector<2x1x1xf32> to vector<2x8x1xf32>
    %28 = arith.subf %20, %27 : vector<2x8x1xf32>
    %29 = math.exp %28 : vector<2x8x1xf32>
    %c0_16 = arith.constant 0 : index
    %c0_17 = arith.constant 0 : index
    %c0_18 = arith.constant 0 : index
    %30 = vector.load %arg9[%c0_16, %c0_17, %c0_18] : memref<2x1x1xf32, #tpu.memory_space<vmem>>, vector<2x1x1xf32>
    %31 = arith.mulf %26, %30 : vector<2x1x1xf32>
    %cst_19 = arith.constant dense<0.000000e+00> : vector<2x1xf32>
    %32 = vector.multi_reduction <add>, %29, %cst_19 [1] : vector<2x8x1xf32> to vector<2x1xf32>
    %33 = vector.shape_cast %32 : vector<2x1xf32> to vector<2x1x1xf32>
    %34 = arith.addf %31, %33 : vector<2x1x1xf32>
    %c0_20 = arith.constant 0 : index
    %c0_21 = arith.constant 0 : index
    %c0_22 = arith.constant 0 : index
    %35 = vector.load %arg9[%c0_20, %c0_21, %c0_22] : memref<2x1x1xf32, #tpu.memory_space<vmem>>, vector<2x1x1xf32>
    tpu.vector_store %arg9[%c0_20, %c0_21, %c0_22], %34 {strides = array<i32>} : memref<2x1x1xf32, #tpu.memory_space<vmem>>, vector<2x1x1xf32>,
    %36 = vector.broadcast %29 : vector<2x8x1xf32> to vector<2x8x32xf32>
    %37 = arith.mulf %36, %3 : vector<2x8x32xf32>
    %cst_23 = arith.constant dense<0.000000e+00> : vector<2x32xf32>
    %38 = vector.multi_reduction <add>, %37, %cst_23 [1] : vector<2x8x32xf32> to vector<2x32xf32>
    %39 = vector.shape_cast %26 : vector<2x1x1xf32> to vector<2x1xf32>
    %c0_24 = arith.constant 0 : index
    %c0_25 = arith.constant 0 : index
    %40 = vector.load %arg10[%c0_24, %c0_25] : memref<2x32xf32, #tpu.memory_space<vmem>>, vector<2x32xf32>
    %41 = vector.broadcast %39 : vector<2x1xf32> to vector<2x32xf32>
    %42 = arith.mulf %41, %40 : vector<2x32xf32>
    %43 = arith.addf %42, %38 : vector<2x32xf32>
    %c0_26 = arith.constant 0 : index
    %c0_27 = arith.constant 0 : index
    %44 = vector.load %arg10[%c0_26, %c0_27] : memref<2x32xf32, #tpu.memory_space<vmem>>, vector<2x32xf32>
    tpu.vector_store %arg10[%c0_26, %c0_27], %43 {strides = array<i32>} : memref<2x32xf32, #tpu.memory_space<vmem>>, vector<2x32xf32>,
    %c0_28 = arith.constant 0 : index
    %c0_29 = arith.constant 0 : index
    %c0_30 = arith.constant 0 : index
    %45 = vector.load %arg8[%c0_28, %c0_29, %c0_30] : memref<2x1x1xf32, #tpu.memory_space<vmem>>, vector<2x1x1xf32>
    tpu.vector_store %arg8[%c0_28, %c0_29, %c0_30], %24 {strides = array<i32>} : memref<2x1x1xf32, #tpu.memory_space<vmem>>, vector<2x1x1xf32>,
    %c0_i32_31 = arith.constant 0 : i32
    %46 = arith.cmpi eq, %arg1, %c0_i32_31 : i32
    %47 = arith.extui %46 : i1 to i32
    %c0_i32_32 = arith.constant 0 : i32
    %48 = arith.cmpi ne, %47, %c0_i32_32 : i32
    scf.if %48 {
      %c0_33 = arith.constant 0 : index
      %c0_34 = arith.constant 0 : index
      %49 = vector.load %arg10[%c0_33, %c0_34] : memref<2x32xf32, #tpu.memory_space<vmem>>, vector<2x32xf32>
      %c0_35 = arith.constant 0 : index
      %c0_36 = arith.constant 0 : index
      %c0_37 = arith.constant 0 : index
      %50 = vector.load %arg9[%c0_35, %c0_36, %c0_37] : memref<2x1x1xf32, #tpu.memory_space<vmem>>, vector<2x1x1xf32>
      %51 = vector.shape_cast %50 : vector<2x1x1xf32> to vector<2x1xf32>
      %52 = vector.broadcast %51 : vector<2x1xf32> to vector<2x32xf32>
      %53 = arith.divf %49, %52 : vector<2x32xf32>
      %c0_38 = arith.constant 0 : index
      %c0_39 = arith.constant 0 : index
      %54 = vector.load %arg7[%c0_38, %c0_39] : memref<2x32xf32, #tpu.memory_space<vmem>>, vector<2x32xf32>
      tpu.vector_store %arg7[%c0_38, %c0_39], %53 {strides = array<i32>} : memref<2x32xf32, #tpu.memory_space<vmem>>, vector<2x32xf32>,
    } else {
    }
    return
  }
  func.func @transform_0(%arg0: i32, %arg1: i32) -> (i32, i32, i32) {
    %c0_i32 = arith.constant 0 : i32
    %c0_i32_0 = arith.constant 0 : i32
    return %arg0, %arg1, %c0_i32 : i32, i32, i32
  }
  func.func @transform_1(%arg0: i32, %arg1: i32) -> (i32, i32) {
    %c0_i32 = arith.constant 0 : i32
    %c0_i32_0 = arith.constant 0 : i32
    %c0_i32_1 = arith.constant 0 : i32
    return %c0_i32, %c0_i32_0 : i32, i32
  }
  func.func @transform_2(%arg0: i32, %arg1: i32) -> (i32, i32) {
    %c0_i32 = arith.constant 0 : i32
    %c0_i32_0 = arith.constant 0 : i32
    %c0_i32_1 = arith.constant 0 : i32
    return %c0_i32, %c0_i32_0 : i32, i32
  }
  func.func @transform_3(%arg0: i32, %arg1: i32) -> (i32, i32) {
    %c0_i32 = arith.constant 0 : i32
    %c0_i32_0 = arith.constant 0 : i32
    %c0_i32_1 = arith.constant 0 : i32
    return %c0_i32, %c0_i32_0 : i32, i32
  }
  func.func @transform_4(%arg0: i32, %arg1: i32) -> (i32, i32) {
    %c0_i32 = arith.constant 0 : i32
    %c0_i32_0 = arith.constant 0 : i32
    %c0_i32_1 = arith.constant 0 : i32
    return %c0_i32, %c0_i32_0 : i32, i32
  }
  func.func @transform_5(%arg0: i32, %arg1: i32) -> (i32, i32) {
    %c0_i32 = arith.constant 0 : i32
    %c0_i32_0 = arith.constant 0 : i32
    return %arg0, %c0_i32 : i32, i32
  }
}

</mosaic_0001>

<llo_original>
// kernel: tpu_custom_call.1
$region0: #{tpu_custom_call.1}
  #allocation0 [shape = 'u32[]', space=smem, size = 0x4, offset = 0x4, fixed_abs, tag = 'smem constant byte address 0x4 - core index']
  #allocation1 [shape = 'u32[144,128]{1,0:T(1,128)}', space=vmem, size = 0x12000, scoped, tag = 'internal scratch']
  #allocation2 [shape = 'f32[2,1,1]{2,1,0:T(1,128)}', space=vmem, size = 0x400, scoped, tag = 'scratch operand']
  #allocation3 [shape = 'f32[2,1,1]{2,1,0:T(1,128)}', space=vmem, size = 0x400, scoped, tag = 'scratch operand']
  #allocation4 [shape = 'f32[2,32]{1,0:T(2,128)}', space=vmem, size = 0x400, scoped, tag = 'scratch operand']
  #allocation5 [shape = 'f32[1,1]{1,0:T(1,128)S(1)}', space=vmem, size = 0x200, scoped, tag = 'scoped memory for tpu_custom_call.1']
  %s0 = inlined_call_operand.vmem [shape: f32[2,8,32], index: 0, kind: input, shape index: {}]
  %s1 = inlined_call_operand.vmem [shape: f32[32,16], index: 1, kind: input, shape index: {}]
  %s2 = inlined_call_operand.vmem [shape: f32[1,16], index: 2, kind: input, shape index: {}]
  %s3 = inlined_call_operand.vmem [shape: f32[1,16], index: 3, kind: input, shape index: {}]
  %s4 = inlined_call_operand.<no memory space> [shape: f32[1,1], index: 4, kind: input, shape index: {}]
  %s5 = inlined_call_operand.hbm [shape: f32[2,32], index: 5, kind: output, shape index: {}]
  %s6 = sld [smem:[#allocation0]]
  $region38: #{tpu_custom_call.1} parent=0
    _
  %s8 = ssub.s32 1, %s6
  %s9 = scalar_select 0, %s8, %s6
  %v10 = vstv %s4
  %11 = vst [vmem:[#allocation5] sm:$0x1] %v10
  $region1: #{tpu_custom_call.1} parent=0
    #allocation6 [shape = 'u8[1024]{0}', space=vmem, size = 0x400, scoped, tag = 'output window, operand 0, single buffered']
    #allocation7 [shape = 's32[1]{0}', space=sflag, size = 0x4, scoped, tag = 'scoped memory for tpu_custom_call.1']
    %12 = vsyncpa [#allocation7], 0
    // Predicated region
    $region2: #{tpu_custom_call.1} parent=1 // pred_check
      _
    $region3: #{tpu_custom_call.1} parent=1 // pred_check_branch
      %14 = sbr.rel (0) target = $region5
    $region4: #{tpu_custom_call.1} parent=1 // pred_region
      _
    $region5: #{tpu_custom_call.1} parent=1 // pred_fallthru
      _
    // Predicated region
    $region6: #{tpu_custom_call.1} parent=1 // pred_check
      _
    $region7: #{tpu_custom_call.1} parent=1 // pred_check_branch
      %16 = sbr.rel (0) target = $region9
    $region8: #{tpu_custom_call.1} parent=1 // pred_region
      _
    $region9: #{tpu_custom_call.1} parent=1 // pred_fallthru
      _
    // Predicated region
    $region10: #{tpu_custom_call.1} parent=1 // pred_check
      _
    $region11: #{tpu_custom_call.1} parent=1 // pred_check_branch
      %18 = sbr.rel (0) target = $region13
    $region12: #{tpu_custom_call.1} parent=1 // pred_region
      _
    $region13: #{tpu_custom_call.1} parent=1 // pred_fallthru
      _
    // Predicated region
    $region14: #{tpu_custom_call.1} parent=1 // pred_check
      _
    $region15: #{tpu_custom_call.1} parent=1 // pred_check_branch
      %20 = sbr.rel (0) target = $region17
    $region16: #{tpu_custom_call.1} parent=1 // pred_region
      _
    $region17: #{tpu_custom_call.1} parent=1 // pred_fallthru
      _
    // Predicated region
    $region18: #{tpu_custom_call.1} parent=1 // pred_check
      _
    $region19: #{tpu_custom_call.1} parent=1 // pred_check_branch
      %22 = sbr.rel (0) target = $region21
    $region20: #{tpu_custom_call.1} parent=1 // pred_region
      _
    $region21: #{tpu_custom_call.1} parent=1 // pred_fallthru
      _
    %p23 = scmp.eq.s32.totalorder 0, 0
    // Predicated region
    $region22: #{tpu_custom_call.1} parent=1 // pred_check
      %p24 = pneg %p23
    $region23: #{tpu_custom_call.1} parent=1 // pred_check_branch
      %26 = sbr.rel (%p24) target = $region25
    $region24: #{tpu_custom_call.1} parent=1 // pred_region
      %vm27 = vcmask 0
      %28 = vst.msk [vmem:[#allocation2] sm:$0x1] %vm27, -inf
      %29 = vst.msk [vmem:[#allocation2 + $0x1] sm:$0x1] %vm27, -inf
      %30 = vst.msk [vmem:[#allocation3] sm:$0x1] %vm27, 0.0
      %31 = vst.msk [vmem:[#allocation3 + $0x1] sm:$0x1] %vm27, 0.0
      %vm32 = vcmask 254976
      %33 = vst.msk [vmem:[#allocation4] sm:$0x3] %vm32, 0.0
    $region25: #{tpu_custom_call.1} parent=1 // pred_fallthru
      _
    %v34 = vld [vmem:[%s0] sm:$0xff]
    %v35 = vld [vmem:[%s0 + $0x8] sm:$0xff]
    %v36 = vld [vmem:[%s1] sm:$0xff]
    %v37 = vld [vmem:[%s1 + $0x8] sm:$0xff]
    %v38 = vld [vmem:[%s1 + $0x10] sm:$0xff]
    %v39 = vld [vmem:[%s1 + $0x18] sm:$0xff]
    %v40 = vld [vmem:[%s2] sm:$0x1]
    %v42 = vlaneseq
    %v43 = vshrl.u32 %v42, 7
    %v44 = vsub.s32 0, %v43
    %v45 = vrot.slane %v40, %v44
    %vm47 = vcmask 261120
    %v49 = vsel %vm47, %v34, 0
    %v52 = vsel %vm47, %v35, 0
    %54 = vmatprep.subr.mxu0 0.0
    %55 = vmatpush1.msra.mxu0 %v36
    %56 = vmatprep.subr.mxu0 0.0
    %57 = vmatpush1.msra.mxu0 %v37
    %58 = vmatprep.subr.mxu0 0.0
    %59 = vmatpush1.msra.mxu0 %v38
    %60 = vmatprep.subr.mxu0 0.0
    %61 = vmatpush1.msra.mxu0 %v39
    %62 = vmatprep.subr.mxu0 0.0
    %63 = vmatpush1.msra.mxu0 0.0
    %64 = vmatprep.subr.mxu0 0.0
    %65 = vmatpush1.msra.mxu0 0.0
    %66 = vmatprep.subr.mxu0 0.0
    %67 = vmatpush1.msra.mxu0 0.0
    %68 = vmatprep.subr.mxu0 0.0
    %69 = vmatpush1.msra.mxu0 0.0
    %70 = vmatprep.subr.mxu0 0.0
    %71 = vmatpush1.msra.mxu0 0.0
    %72 = vmatprep.subr.mxu0 0.0
    %73 = vmatpush1.msra.mxu0 0.0
    %74 = vmatprep.subr.mxu0 0.0
    %75 = vmatpush1.msra.mxu0 0.0
    %76 = vmatprep.subr.mxu0 0.0
    %77 = vmatpush1.msra.mxu0 0.0
    %78 = vmatprep.subr.mxu0 0.0
    %79 = vmatpush1.msra.mxu0 0.0
    %80 = vmatprep.subr.mxu0 0.0
    %81 = vmatpush1.msra.mxu0 0.0
    %82 = vmatprep.subr.mxu0 0.0
    %83 = vmatpush1.msra.mxu0 0.0
    %84 = vmatprep.subr.mxu0 0.0
    %85 = vmatpush1.msra.mxu0 0.0
    %86 = vmatprep.subr.mxu0 0.0
    %87 = vmatpush1.msra.mxu0 0.0
    %88 = vmatprep.subr.mxu0 0.0
    %89 = vmatpush1.msra.mxu0 0.0
    %90 = vmatprep.subr.mxu0 0.0
    %91 = vmatpush1.msra.mxu0 0.0
    %92 = vmatprep.subr.mxu0 0.0
    %93 = vmatpush1.msra.mxu0 0.0
    %94 = vmatprep.subr.mxu0 0.0
    %95 = vmatpush1.msra.mxu0 0.0
    %96 = vmatprep.subr.mxu0 0.0
    %97 = vmatpush1.msra.mxu0 0.0
    %98 = vmatprep.subr.mxu0 0.0
    %99 = vmatpush1.msra.mxu0 0.0
    %100 = vmatprep.subr.mxu0 0.0
    %101 = vmatpush1.msra.mxu0 0.0
    %102 = vmatprep.subr.mxu0 0.0
    %103 = vmatpush1.msra.mxu0 0.0
    %104 = vmatprep.subr.mxu0 0.0
    %105 = vmatpush1.msra.mxu0 0.0
    %106 = vmatprep.subr.mxu0 0.0
    %107 = vmatpush1.msra.mxu0 0.0
    %108 = vmatprep.subr.mxu0 0.0
    %109 = vmatpush1.msra.mxu0 0.0
    %110 = vmatprep.subr.mxu0 0.0
    %111 = vmatpush1.msra.mxu0 0.0
    %112 = vmatprep.subr.mxu0 0.0
    %113 = vmatpush1.msra.mxu0 0.0
    %114 = vmatprep.subr.mxu0 0.0
    %115 = vmatpush1.msra.mxu0 0.0
    %116 = vmatprep.subr.mxu0 0.0
    %117 = vmatpush1.msra.mxu0 0.0
    %118 = vmatprep.mubr.f32.mxu0 0.0
    %119 = vmatmul.mubr.f32.gmra.mrb[0].mxu0 %v49
    %v120 = vpop.f32.mrb[0].mxu0
    %v121 = vadd.f32 %v45, %v120
    %v122 = vpop.f32.mrb[0].mxu0
    %123 = vmatprep.mubr.f32.mxu0 0.0
    %124 = vmatmul.mubr.f32.gmra.mrb[0].mxu0 %v52
    %v125 = vpop.f32.mrb[0].mxu0
    %v126 = vadd.f32 %v45, %v125
    %v127 = vpop.f32.mrb[0].mxu0
    %128 = vdwg.mxu0
    %v129 = vtanh.pop %v121
    %v130 = vtanh.pop %v126
    %v131 = vld [vmem:[%s3] sm:$0x1]
    %v133 = vlaneseq
    %v134 = vshrl.u32 %v133, 7
    %v135 = vsub.s32 0, %v134
    %v136 = vrot.slane %v131, %v135
    %v138 = vmul.f32 %v129, %v136
    %v139 = vmul.f32 %v130, %v136
    %vm140 = vcmask 130048
    %v141 = vsel %vm140, %v138, 0.0
    %142 = vadd.xlane.f32.xlu0 %v141
    %v143 = vpop.xlane.xlu0 %142
    %v144 = vsel %vm140, %v139, 0.0
    %145 = vadd.xlane.f32.xlu0 %v144
    %v146 = vpop.xlane.xlu0 %145
    %v147 = vld [vmem:[#allocation5] sm:$0x1]
    %s148 = vtos %v147
    %v149 = vstv %s148
    %v150 = vadd.f32 %v143, %v149
    %v151 = vadd.f32 %v146, %v149
    %v152 = vld [vmem:[#allocation2] sm:$0x1]
    %v153 = vld [vmem:[#allocation2 + $0x1] sm:$0x1]
    %v154 = vrot.slane %v150, 4
    %v155 = vmax.f32 %v150, %v154
    %v156 = vrot.slane %v155, 2
    %v157 = vmax.f32 %v155, %v156
    %v158 = vrot.slane %v157, 1
    %v159 = vmax.f32 %v157, %v158
    %v160 = vrot.slane %v151, 4
    %v161 = vmax.f32 %v151, %v160
    %v162 = vrot.slane %v161, 2
    %v163 = vmax.f32 %v161, %v162
    %v164 = vrot.slane %v163, 1
    %v165 = vmax.f32 %v163, %v164
    %v166 = vmax.f32 %v152, %v159
    %v167 = vmax.f32 %v153, %v165
    %v168 = vsub.f32 %v152, %v166
    %v169 = vsub.f32 %v153, %v167
    %v170 = vmul.f32 %v168, 1.442695
    %v171 = vpow.pop %v170
    %v172 = vmul.f32 %v169, 1.442695
    %v173 = vpow.pop %v172
    %v176 = vlaneseq
    %v177 = vshrl.u32 %v176, 7
    %v178 = vsub.s32 0, %v177
    %v179 = vrot.slane %v166, %v178
    %v180 = vlaneseq
    %v181 = vshrl.u32 %v180, 7
    %v182 = vsub.s32 0, %v181
    %v183 = vrot.slane %v167, %v182
    %v186 = vsub.f32 %v150, %v179
    %v187 = vsub.f32 %v151, %v183
    %v188 = vmul.f32 %v186, 1.442695
    %v189 = vpow.pop %v188
    %v190 = vmul.f32 %v187, 1.442695
    %v191 = vpow.pop %v190
    %v192 = vld [vmem:[#allocation3] sm:$0x1]
    %v193 = vld [vmem:[#allocation3 + $0x1] sm:$0x1]
    %v194 = vmul.f32 %v171, %v192
    %v195 = vmul.f32 %v173, %v193
    %vm196 = vcmask 7168
    %v197 = vsel %vm196, %v189, 0.0
    %v198 = vrot.slane %v197, 4
    %v199 = vadd.f32 %v197, %v198
    %v200 = vrot.slane %v199, 2
    %v201 = vadd.f32 %v199, %v200
    %v202 = vrot.slane %v201, 1
    %v203 = vadd.f32 %v201, %v202
    %v204 = vsel %vm196, %v191, 0.0
    %v205 = vrot.slane %v204, 4
    %v206 = vadd.f32 %v204, %v205
    %v207 = vrot.slane %v206, 2
    %v208 = vadd.f32 %v206, %v207
    %v209 = vrot.slane %v208, 1
    %v210 = vadd.f32 %v208, %v209
    %v211 = vadd.f32 %v194, %v203
    %v212 = vadd.f32 %v195, %v210
    %vm213 = vcmask 0
    %214 = vst.msk [vmem:[#allocation3] sm:$0x1] %vm213, %v211
    %215 = vst.msk [vmem:[#allocation3 + $0x1] sm:$0x1] %vm213, %v212
    %217 = vset.pattern.permute.xlu0 0
    %218 = vperm.xlu0 %217, %v189
    %v219 = vpop.permute.xlu0 %218
    %222 = vset.pattern.permute.xlu0 0
    %223 = vperm.xlu0 %222, %v191
    %v224 = vpop.permute.xlu0 %223
    %v226 = vmul.f32 %v219, %v34
    %v227 = vmul.f32 %v224, %v35
    %v228 = vsel %vm47, %v226, 0.0
    %v229 = vrot.slane %v228, 4
    %v230 = vadd.f32 %v228, %v229
    %v231 = vrot.slane %v230, 2
    %v232 = vadd.f32 %v230, %v231
    %v233 = vrot.slane %v232, 1
    %v234 = vadd.f32 %v232, %v233
    %v235 = vsel %vm47, %v227, 0.0
    %v236 = vrot.slane %v235, 4
    %v237 = vadd.f32 %v235, %v236
    %v238 = vrot.slane %v237, 2
    %v239 = vadd.f32 %v237, %v238
    %v240 = vrot.slane %v239, 1
    %v241 = vadd.f32 %v239, %v240
    %v242 = vld [vmem:[#allocation4] sm:$0x3]
    %244 = vset.pattern.permute.xlu0 0
    %245 = vperm.xlu0 %244, %v171
    %v246 = vpop.permute.xlu0 %245
    %v248 = vlaneseq
    %v249 = vshrl.u32 %v248, 7
    %v250 = vsub.s32 0, %v249
    %v251 = vrot.slane %v246, %v250
    %253 = vset.pattern.permute.xlu0 0
    %254 = vperm.xlu0 %253, %v173
    %v255 = vpop.permute.xlu0 %254
    %v257 = vlaneseq
    %v258 = vshrl.u32 %v257, 7
    %v259 = vsub.s32 0, %v258
    %v260 = vrot.slane %v255, %v259
    %v263 = vunpack.c.l.s4 1966171168
    %v264 = vunpack.c.0.s8 %v263
    %v265 = vlaneseq
    %v266 = vshrl.u32 %v265, 7
    %v267 = vsub.s32 %v264, %v266
    %v268 = vrot.slane %v242, %v267
    %v269 = vcombine.high %v268, %v268
    %v271 = vunpack.c.l.s4 1966171168
    %v272 = vunpack.c.0.s8 %v271
    %v273 = vlaneseq
    %v274 = vshrl.u32 %v273, 7
    %v275 = vsub.s32 %v272, %v274
    %v276 = vrot.slane %v268, %v275
    %v278 = vunpack.c.l.s4 1966171168
    %v279 = vunpack.c.0.s8 %v278
    %v280 = vlaneseq
    %v281 = vshrl.u32 %v280, 7
    %v282 = vsub.s32 %v279, %v281
    %v283 = vrot.slane %v269, %v282
    %v286 = vmul.f32 %v251, %v276
    %v287 = vmul.f32 %v260, %v283
    %v291 = vunpack.c.l.s4 1966171168
    %v292 = vunpack.c.0.s8 %v291
    %v293 = vlaneseq
    %v294 = vshrl.u32 %v293, 7
    %v295 = vsub.s32 %v292, %v294
    %v296 = vrot.slane %v234, %v295
    %v298 = vunpack.c.l.s4 1966171168
    %v299 = vunpack.c.0.s8 %v298
    %v300 = vlaneseq
    %v301 = vshrl.u32 %v300, 7
    %v302 = vsub.s32 %v299, %v301
    %v303 = vrot.slane %v296, %v302
    %v305 = vunpack.c.l.s4 1966171168
    %v306 = vunpack.c.0.s8 %v305
    %v307 = vlaneseq
    %v308 = vshrl.u32 %v307, 7
    %v309 = vsub.s32 %v306, %v308
    %v310 = vrot.slane %v241, %v309
    %v312 = vunpack.c.l.s4 1966171168
    %v313 = vunpack.c.0.s8 %v312
    %v314 = vlaneseq
    %v315 = vshrl.u32 %v314, 7
    %v316 = vsub.s32 %v313, %v315
    %v317 = vrot.slane %v310, %v316
    %v320 = vadd.f32 %v286, %v303
    %v321 = vadd.f32 %v287, %v317
    %v324 = vcombine.low %v320, %v321
    %v326 = vunpack.c.l.s4 1966171168
    %v327 = vunpack.c.0.s8 %v326
    %v328 = vlaneseq
    %v329 = vshrl.u32 %v328, 7
    %v330 = vsub.s32 %v327, %v329
    %v331 = vrot.slane %v324, %v330
    %v333 = vunpack.c.l.s4 1966171168
    %v334 = vunpack.c.0.s8 %v333
    %v335 = vlaneseq
    %v336 = vshrl.u32 %v335, 7
    %v337 = vsub.s32 %v334, %v336
    %v338 = vrot.slane %v331, %v337
    %vm340 = vcmask 254976
    %341 = vst.msk [vmem:[#allocation4] sm:$0x3] %vm340, %v338
    %342 = vst.msk [vmem:[#allocation2] sm:$0x1] %vm213, %v166
    %343 = vst.msk [vmem:[#allocation2 + $0x1] sm:$0x1] %vm213, %v167
    // Predicated region
    $region26: #{tpu_custom_call.1} parent=1 // pred_check
      %p344 = pneg %p23
    $region27: #{tpu_custom_call.1} parent=1 // pred_check_branch
      %346 = sbr.rel (%p344) target = $region29
    $region28: #{tpu_custom_call.1} parent=1 // pred_region
      %v347 = vld [vmem:[#allocation4] sm:$0x3]
      %v348 = vld [vmem:[#allocation3] sm:$0x1]
      %v349 = vld [vmem:[#allocation3 + $0x1] sm:$0x1]
      %351 = vset.pattern.permute.xlu0 0
      %352 = vperm.xlu0 %351, %v348
      %v353 = vpop.permute.xlu0 %352
      %v355 = vlaneseq
      %v356 = vshrl.u32 %v355, 7
      %v357 = vsub.s32 0, %v356
      %v358 = vrot.slane %v353, %v357
      %360 = vset.pattern.permute.xlu0 0
      %361 = vperm.xlu0 %360, %v349
      %v362 = vpop.permute.xlu0 %361
      %v364 = vlaneseq
      %v365 = vshrl.u32 %v364, 7
      %v366 = vsub.s32 0, %v365
      %v367 = vrot.slane %v362, %v366
      %v370 = vcombine.low %v358, %v367
      %v372 = vunpack.c.l.s4 1966171168
      %v373 = vunpack.c.0.s8 %v372
      %v374 = vlaneseq
      %v375 = vshrl.u32 %v374, 7
      %v376 = vsub.s32 %v373, %v375
      %v377 = vrot.slane %v370, %v376
      %v379 = vunpack.c.l.s4 1966171168
      %v380 = vunpack.c.0.s8 %v379
      %v381 = vlaneseq
      %v382 = vshrl.u32 %v381, 7
      %v383 = vsub.s32 %v380, %v382
      %v384 = vrot.slane %v377, %v383
      %v386 = vrcp.pop %v384
      %v387 = vmul.f32 %v347, %v386
      %388 = vst.msk [vmem:[#allocation6] sm:$0x3] %vm340, %v387
    $region29: #{tpu_custom_call.1} parent=1 // pred_fallthru
      _
    // Predicated region
    $region30: #{tpu_custom_call.1} parent=1 // pred_check
      _
    $region31: #{tpu_custom_call.1} parent=1 // pred_check_branch
      %390 = sbr.rel (0) target = $region33
    $region32: #{tpu_custom_call.1} parent=1 // pred_region
      %s392 = ssub.s32 32, 32
      %393 = vsyncadd [#allocation7], %s392
      %s395 = sshll.u32 [#allocation6], 4
      %s396 = int_to_ptr.vmem [resolvable:$true] %s395
      %398 = dma.vmem_to_hbm [thread:$0]  %s396, 32, %s5, [#allocation7]
    $region33: #{tpu_custom_call.1} parent=1 // pred_fallthru
      _
    // Predicated region
    $region34: #{tpu_custom_call.1} parent=1 // pred_check
      _
    $region35: #{tpu_custom_call.1} parent=1 // pred_check_branch
      %400 = sbr.rel (0) target = $region37
    $region36: #{tpu_custom_call.1} parent=1 // pred_region
      %401 = dma.done [#allocation7], 32
    $region37: #{tpu_custom_call.1} parent=1 // pred_fallthru
      _
    %402 = vsyncpa [#allocation7], 1

</llo_original>
